<compile_context>
chip_gen: v6e
topology: v6e:2x2x1
jax: 0.10.0
libtpu: 0.0.40
codegen_flags: <defaults>
</compile_context>

<pallas_src>
import functools

import jax
import jax.numpy as jnp
from jax.experimental import pallas as pl
from jax.experimental.pallas import tpu as pltpu


LANE = 128          # last-dim padding granularity (vreg lane width)
SUBLANE_BF16 = 16   # bf16 vreg packs [16, 128] -> batch tile multiple of 16


def _round_up(x, m):
    return ((x + m - 1) // m) * m


# ---------------------------------------------------------------------------
# Fused MLP kernel: statically unrolled layer loop inside one invocation.
# ---------------------------------------------------------------------------
def _mlp_kernel(*refs, n_layers_total):
    # refs = [x_ref, W_0..W_{L-1}, b_0..b_{L-1}, o_ref]
    #   x_ref : (TB, X_P)    bf16
    #   W_l   : (P_in_l, P_out_l) bf16   (per-layer padded shapes)
    #   b_l   : (1, P_out_l) f32
    #   o_ref : (TB, OUT_P)  bf16 (or requested out dtype)
    x_ref = refs[0]
    w_refs = refs[1:1 + n_layers_total]
    b_refs = refs[1 + n_layers_total:1 + 2 * n_layers_total]
    o_ref = refs[1 + 2 * n_layers_total]

    h = x_ref[...]                                        # bf16 MXU operand
    for l in range(n_layers_total):                       # static unroll
        acc = jnp.dot(h, w_refs[l][...],
                      preferred_element_type=jnp.float32)  # MXU, f32 acc
        acc = acc + b_refs[l][...]                         # f32 epilogue: bias
        if l < n_layers_total - 1:
            # Hidden layer: ReLU then back to bf16 for the next MXU matmul.
            h = jnp.maximum(acc, 0.0).astype(jnp.bfloat16)
        else:
            o_ref[...] = acc.astype(o_ref.dtype)           # final Linear


# ---------------------------------------------------------------------------
# One-time parameter preparation (hoisted out of the per-call path).
# ---------------------------------------------------------------------------
def prepare_params(params):
    """Pad each layer's weight/bias to lane-dense shapes and cast once.

    params: list of (W_t, b) with W_t of shape (fan_in, fan_out)
            (i.e. PyTorch nn.Linear weight transposed).
    Returns list of (W_padded bf16 (P_in, P_out), b_padded f32 (1, P_out)).
    """
    padded = []
    for (w_t, b) in params:
        n_in, n_out = w_t.shape
        p_in, p_out = _round_up(n_in, LANE), _round_up(n_out, LANE)
        wp = jnp.pad(w_t.astype(jnp.bfloat16),
                     ((0, p_in - n_in), (0, p_out - n_out)))
        bp = jnp.pad(b.astype(jnp.float32), (0, p_out - n_out)).reshape(1, p_out)
        padded.append((wp, bp))
    return padded


def _single_buffered_spec(shape, index_map):
    """Constant-index-map BlockSpec; request single buffering when supported."""
    try:
        return pl.BlockSpec(shape, index_map, pipeline_mode=pl.Buffered(1))
    except (TypeError, ValueError):
        # Fallback for jax versions without pipeline_mode / Buffered(1).
        return pl.BlockSpec(shape, index_map)


# ---------------------------------------------------------------------------
# Forward pass: pad batch, launch one pallas_call, slice result.
# ---------------------------------------------------------------------------
def fully_connected_forward(padded_params, x, *, n_outputs, tile_batch=1024,
                            min_grid_steps=4, out_dtype=jnp.bfloat16):
    n_total = len(padded_params)
    B, n_inputs = x.shape
    X_P = padded_params[0][0].shape[0]
    OUT_P = padded_params[-1][0].shape[1]
    assert n_inputs <= X_P

    # ---- batch tile selection -------------------------------------------
    # Multiple of 16 (bf16 sublane packing), as large as tile_batch to
    # amortize per-grid-step overhead, but capped so the grid keeps at least
    # `min_grid_steps` steps (megacore sharding + per-core pipelining).
    B16 = _round_up(max(B, 1), SUBLANE_BF16)
    cap = max(SUBLANE_BF16,
              (B16 // min_grid_steps) // SUBLANE_BF16 * SUBLANE_BF16)
    TB = max(SUBLANE_BF16,
             min(_round_up(tile_batch, SUBLANE_BF16), B16, cap))
    B_pad = _round_up(B, TB)
    n_steps = B_pad // TB

    # ---- pad the input batch (features to X_P, rows to B_pad) ------------
    x_pad = jnp.pad(x.astype(jnp.bfloat16),
                    ((0, B_pad - B), (0, X_P - n_inputs)))

    # ---- VMEM budget ------------------------------------------------------
    out_itemsize = jnp.dtype(out_dtype).itemsize
    param_bytes = sum(int(w.size) * 2 + int(b.size) * 4
                      for (w, b) in padded_params)        # single-buffered
    io_bytes = 2 * TB * X_P * 2 + 2 * TB * OUT_P * out_itemsize  # dbl-buffered
    max_width = max(w.shape[1] for (w, _) in padded_params)
    act_bytes = TB * max_width * (4 + 2)                   # f32 acc + bf16 h
    vmem_needed = param_bytes + io_bytes + act_bytes
    vmem_limit = min(max(2 * vmem_needed + (4 << 20), 16 << 20), 64 << 20)

    # ---- BlockSpecs --------------------------------------------------------
    in_specs = [pl.BlockSpec((TB, X_P), lambda i: (i, 0))]          # x tile
    for (w, _) in padded_params:                                    # weights
        in_specs.append(_single_buffered_spec(w.shape, lambda i: (0, 0)))
    for (_, b) in padded_params:                                    # biases
        in_specs.append(_single_buffered_spec(b.shape, lambda i: (0, 0)))

    args = ([x_pad]
            + [w for (w, _) in padded_params]
            + [b for (_, b) in padded_params])

    kernel = functools.partial(_mlp_kernel, n_layers_total=n_total)
    out_pad = pl.pallas_call(
        kernel,
        out_shape=jax.ShapeDtypeStruct((B_pad, OUT_P), out_dtype),
        grid_spec=pltpu.PrefetchScalarGridSpec(
            num_scalar_prefetch=0,
            grid=(n_steps,),
            in_specs=in_specs,
            out_specs=pl.BlockSpec((TB, OUT_P), lambda i: (i, 0)),
        ),
        compiler_params=pltpu.CompilerParams(
            dimension_semantics=("parallel",),   # megacore-shardable batch axis
            vmem_limit_bytes=int(vmem_limit),
        ),
    )(*args)

    return out_pad[:B, :n_outputs]


def make_fully_connected(params, *, tile_batch=1024, min_grid_steps=4,
                         out_dtype=jnp.bfloat16):
    """Build a jitted forward fn; parameter padding happens exactly once."""
    padded = prepare_params(params)
    n_outputs = params[-1][0].shape[1]
    fwd = jax.jit(functools.partial(
        fully_connected_forward,
        n_outputs=n_outputs, tile_batch=tile_batch,
        min_grid_steps=min_grid_steps, out_dtype=out_dtype))

    def forward(x):
        return fwd(padded, x)

    return forward


# ---------------------------------------------------------------------------
# Parameter construction (deterministic, mirrors module __init__ shapes).
# ---------------------------------------------------------------------------
def init_fully_connected(key, n_inputs, n_outputs, n_layers, width,
                         skip_connections=False):
    """Returns list of (W_t, b); hidden layers use ReLU, the last is plain."""
    nominal_width = width
    if skip_connections:
        nominal_width = (nominal_width - n_inputs) // 2

    layer_dims = []
    n_in = n_inputs
    n_out = nominal_width
    for i in range(n_layers):
        layer_dims.append((n_in, n_out))
        if skip_connections:
            if i == 0:
                n_in = n_out + n_inputs
            else:
                n_in = 2 * n_out + n_inputs
        else:
            n_in = n_out
    layer_dims.append((n_in, n_outputs))  # final Linear

    params = []
    for (fan_in, fan_out) in layer_dims:
        key, kw, kb = jax.random.split(key, 3)
        bound = 1.0 / jnp.sqrt(jnp.float32(fan_in))
        # PyTorch Linear default init: U(-1/sqrt(fan_in), 1/sqrt(fan_in))
        w_t = jax.random.uniform(kw, (fan_in, fan_out), jnp.float32,
                                 minval=-bound, maxval=bound)
        b = jax.random.uniform(kb, (fan_out,), jnp.float32,
                               minval=-bound, maxval=bound)
        params.append((w_t, b))
    return params


# ---------------------------------------------------------------------------
# Pure-JAX references for correctness checking.
# ---------------------------------------------------------------------------
def fully_connected_ref_bf16(params, x):
    """Same arithmetic as the kernel (bf16 MXU operands, f32 accumulation)."""
    n_total = len(params)
    h = x.astype(jnp.bfloat16)
    out = None
    for l, (w_t, b) in enumerate(params):
        acc = jnp.dot(h, w_t.astype(jnp.bfloat16),
                      preferred_element_type=jnp.float32) + b
        if l < n_total - 1:
            h = jnp.maximum(acc, 0.0).astype(jnp.bfloat16)
        else:
            out = acc
    return out


def fully_connected_ref_f32(params, x):
    """Full-precision reference (PyTorch semantics, f32 throughout)."""
    n_total = len(params)
    h = x
    out = None
    for l, (w_t, b) in enumerate(params):
        acc = h @ w_t + b
        if l < n_total - 1:
            h = jnp.maximum(acc, 0.0)
        else:
            out = acc
    return out


if __name__ == "__main__":
    key = jax.random.PRNGKey(0)
    key_x, key_p = jax.random.split(key)

    # Small shapes consistent with the module: 3 hidden layers of width 32.
    batch, n_inputs, n_outputs, n_layers, width = 256, 16, 8, 3, 32
    x = jax.random.normal(key_x, (batch, n_inputs), jnp.float32)
    params = init_fully_connected(key_p, n_inputs, n_outputs, n_layers, width,
                                  skip_connections=False)

    forward = make_fully_connected(params)
    out = jax.block_until_ready(forward(x))
    assert out.shape == (batch, n_outputs), out.shape
    assert out.dtype == jnp.bfloat16, out.dtype
    out_f32 = out.astype(jnp.float32)

    # Check against a bf16-MXU / f32-accumulate JAX reference (then quantized
    # to the kernel's bf16 output dtype).
    ref_bf16 = jax.block_until_ready(fully_connected_ref_bf16(params, x))
    ref_bf16_q = ref_bf16.astype(jnp.bfloat16).astype(jnp.float32)
    assert jnp.allclose(out_f32, ref_bf16_q, atol=2e-2, rtol=2e-2), \
        "mismatch vs bf16 reference"

    # Loose sanity check against the full-f32 (PyTorch-semantics) reference.
    ref_f32 = jax.block_until_ready(fully_connected_ref_f32(params, x))
    assert jnp.allclose(out_f32, ref_f32, atol=6e-2, rtol=6e-2), \
        "mismatch vs f32 reference"

    print("KERNEL_OK")
</pallas_src>

<mosaic_0001>
module attributes {stable_mosaic.version = 11 : i64} {
  func.func @_mlp_kernel(%arg0: i32, %arg1: memref<64x128xbf16, #tpu.memory_space<vmem>>, %arg2: memref<128x128xbf16, #tpu.memory_space<vmem>>, %arg3: memref<128x128xbf16, #tpu.memory_space<vmem>>, %arg4: memref<128x128xbf16, #tpu.memory_space<vmem>>, %arg5: memref<128x128xbf16, #tpu.memory_space<vmem>>, %arg6: memref<1x128xf32, #tpu.memory_space<vmem>>, %arg7: memref<1x128xf32, #tpu.memory_space<vmem>>, %arg8: memref<1x128xf32, #tpu.memory_space<vmem>>, %arg9: memref<1x128xf32, #tpu.memory_space<vmem>>, %arg10: memref<64x128xbf16, #tpu.memory_space<vmem>>) attributes {dimension_semantics = [#tpu.dimension_semantics<parallel>], iteration_bounds = array<i64: 4>, scalar_prefetch = 0 : i64, scratch_operands = 0 : i64, tpu.core_type = #tpu.core_type<tc>, window_params = [{transform_indices = @transform_0, window_bounds = array<i64: 64, 128>}, {pipeline_mode = #tpu.pipeline_mode<synchronous>, transform_indices = @transform_1, window_bounds = array<i64: 128, 128>}, {pipeline_mode = #tpu.pipeline_mode<synchronous>, transform_indices = @transform_2, window_bounds = array<i64: 128, 128>}, {pipeline_mode = #tpu.pipeline_mode<synchronous>, transform_indices = @transform_3, window_bounds = array<i64: 128, 128>}, {pipeline_mode = #tpu.pipeline_mode<synchronous>, transform_indices = @transform_4, window_bounds = array<i64: 128, 128>}, {pipeline_mode = #tpu.pipeline_mode<synchronous>, transform_indices = @transform_5, window_bounds = array<i64: 1, 128>}, {pipeline_mode = #tpu.pipeline_mode<synchronous>, transform_indices = @transform_6, window_bounds = array<i64: 1, 128>}, {pipeline_mode = #tpu.pipeline_mode<synchronous>, transform_indices = @transform_7, window_bounds = array<i64: 1, 128>}, {pipeline_mode = #tpu.pipeline_mode<synchronous>, transform_indices = @transform_8, window_bounds = array<i64: 1, 128>}, {transform_indices = @transform_9, window_bounds = array<i64: 64, 128>}]} {
    %c0 = arith.constant 0 : index
    %c0_0 = arith.constant 0 : index
    %0 = vector.load %arg1[%c0, %c0_0] : memref<64x128xbf16, #tpu.memory_space<vmem>>, vector<64x128xbf16>
    %c0_1 = arith.constant 0 : index
    %c0_2 = arith.constant 0 : index
    %1 = vector.load %arg2[%c0_1, %c0_2] : memref<128x128xbf16, #tpu.memory_space<vmem>>, vector<128x128xbf16>
    %cst = arith.constant dense<0.000000e+00> : vector<64x128xf32>
    %2 = tpu.matmul %0, %1, %cst {dimension_numbers = #tpu.dot_dimension_numbers<[1], [0], [0], [1], [0, 0, 1, 1], [], []>} : vector<64x128xbf16>, vector<128x128xbf16>, vector<64x128xf32> -> vector<64x128xf32>
    %c0_3 = arith.constant 0 : index
    %c0_4 = arith.constant 0 : index
    %3 = vector.load %arg6[%c0_3, %c0_4] : memref<1x128xf32, #tpu.memory_space<vmem>>, vector<1x128xf32>
    %4 = vector.broadcast %3 : vector<1x128xf32> to vector<64x128xf32>
    %5 = arith.addf %2, %4 : vector<64x128xf32>
    %cst_5 = arith.constant 0.000000e+00 : f32
    %6 = vector.broadcast %cst_5 : f32 to vector<64x128xf32>
    %7 = arith.maximumf %5, %6 : vector<64x128xf32>
    %8 = arith.truncf %7 : vector<64x128xf32> to vector<64x128xbf16>
    %c0_6 = arith.constant 0 : index
    %c0_7 = arith.constant 0 : index
    %9 = vector.load %arg3[%c0_6, %c0_7] : memref<128x128xbf16, #tpu.memory_space<vmem>>, vector<128x128xbf16>
    %cst_8 = arith.constant dense<0.000000e+00> : vector<64x128xf32>
    %10 = tpu.matmul %8, %9, %cst_8 {dimension_numbers = #tpu.dot_dimension_numbers<[1], [0], [0], [1], [0, 0, 1, 1], [], []>} : vector<64x128xbf16>, vector<128x128xbf16>, vector<64x128xf32> -> vector<64x128xf32>
    %c0_9 = arith.constant 0 : index
    %c0_10 = arith.constant 0 : index
    %11 = vector.load %arg7[%c0_9, %c0_10] : memref<1x128xf32, #tpu.memory_space<vmem>>, vector<1x128xf32>
    %12 = vector.broadcast %11 : vector<1x128xf32> to vector<64x128xf32>
    %13 = arith.addf %10, %12 : vector<64x128xf32>
    %cst_11 = arith.constant 0.000000e+00 : f32
    %14 = vector.broadcast %cst_11 : f32 to vector<64x128xf32>
    %15 = arith.maximumf %13, %14 : vector<64x128xf32>
    %16 = arith.truncf %15 : vector<64x128xf32> to vector<64x128xbf16>
    %c0_12 = arith.constant 0 : index
    %c0_13 = arith.constant 0 : index
    %17 = vector.load %arg4[%c0_12, %c0_13] : memref<128x128xbf16, #tpu.memory_space<vmem>>, vector<128x128xbf16>
    %cst_14 = arith.constant dense<0.000000e+00> : vector<64x128xf32>
    %18 = tpu.matmul %16, %17, %cst_14 {dimension_numbers = #tpu.dot_dimension_numbers<[1], [0], [0], [1], [0, 0, 1, 1], [], []>} : vector<64x128xbf16>, vector<128x128xbf16>, vector<64x128xf32> -> vector<64x128xf32>
    %c0_15 = arith.constant 0 : index
    %c0_16 = arith.constant 0 : index
    %19 = vector.load %arg8[%c0_15, %c0_16] : memref<1x128xf32, #tpu.memory_space<vmem>>, vector<1x128xf32>
    %20 = vector.broadcast %19 : vector<1x128xf32> to vector<64x128xf32>
    %21 = arith.addf %18, %20 : vector<64x128xf32>
    %cst_17 = arith.constant 0.000000e+00 : f32
    %22 = vector.broadcast %cst_17 : f32 to vector<64x128xf32>
    %23 = arith.maximumf %21, %22 : vector<64x128xf32>
    %24 = arith.truncf %23 : vector<64x128xf32> to vector<64x128xbf16>
    %c0_18 = arith.constant 0 : index
    %c0_19 = arith.constant 0 : index
    %25 = vector.load %arg5[%c0_18, %c0_19] : memref<128x128xbf16, #tpu.memory_space<vmem>>, vector<128x128xbf16>
    %cst_20 = arith.constant dense<0.000000e+00> : vector<64x128xf32>
    %26 = tpu.matmul %24, %25, %cst_20 {dimension_numbers = #tpu.dot_dimension_numbers<[1], [0], [0], [1], [0, 0, 1, 1], [], []>} : vector<64x128xbf16>, vector<128x128xbf16>, vector<64x128xf32> -> vector<64x128xf32>
    %c0_21 = arith.constant 0 : index
    %c0_22 = arith.constant 0 : index
    %27 = vector.load %arg9[%c0_21, %c0_22] : memref<1x128xf32, #tpu.memory_space<vmem>>, vector<1x128xf32>
    %28 = vector.broadcast %27 : vector<1x128xf32> to vector<64x128xf32>
    %29 = arith.addf %26, %28 : vector<64x128xf32>
    %30 = arith.truncf %29 : vector<64x128xf32> to vector<64x128xbf16>
    %c0_23 = arith.constant 0 : index
    %c0_24 = arith.constant 0 : index
    %31 = vector.load %arg10[%c0_23, %c0_24] : memref<64x128xbf16, #tpu.memory_space<vmem>>, vector<64x128xbf16>
    tpu.vector_store %arg10[%c0_23, %c0_24], %30 {strides = array<i32>} : memref<64x128xbf16, #tpu.memory_space<vmem>>, vector<64x128xbf16>,
    return
  }
  func.func @transform_0(%arg0: i32) -> (i32, i32) {
    %c0_i32 = arith.constant 0 : i32
    %c0_i32_0 = arith.constant 0 : i32
    return %arg0, %c0_i32 : i32, i32
  }
  func.func @transform_1(%arg0: i32) -> (i32, i32) {
    %c0_i32 = arith.constant 0 : i32
    %c0_i32_0 = arith.constant 0 : i32
    %c0_i32_1 = arith.constant 0 : i32
    return %c0_i32, %c0_i32_0 : i32, i32
  }
  func.func @transform_2(%arg0: i32) -> (i32, i32) {
    %c0_i32 = arith.constant 0 : i32
    %c0_i32_0 = arith.constant 0 : i32
    %c0_i32_1 = arith.constant 0 : i32
    return %c0_i32, %c0_i32_0 : i32, i32
  }
  func.func @transform_3(%arg0: i32) -> (i32, i32) {
    %c0_i32 = arith.constant 0 : i32
    %c0_i32_0 = arith.constant 0 : i32
    %c0_i32_1 = arith.constant 0 : i32
    return %c0_i32, %c0_i32_0 : i32, i32
  }
  func.func @transform_4(%arg0: i32) -> (i32, i32) {
    %c0_i32 = arith.constant 0 : i32
    %c0_i32_0 = arith.constant 0 : i32
    %c0_i32_1 = arith.constant 0 : i32
    return %c0_i32, %c0_i32_0 : i32, i32
  }
  func.func @transform_5(%arg0: i32) -> (i32, i32) {
    %c0_i32 = arith.constant 0 : i32
    %c0_i32_0 = arith.constant 0 : i32
    %c0_i32_1 = arith.constant 0 : i32
    return %c0_i32, %c0_i32_0 : i32, i32
  }
  func.func @transform_6(%arg0: i32) -> (i32, i32) {
    %c0_i32 = arith.constant 0 : i32
    %c0_i32_0 = arith.constant 0 : i32
    %c0_i32_1 = arith.constant 0 : i32
    return %c0_i32, %c0_i32_0 : i32, i32
  }
  func.func @transform_7(%arg0: i32) -> (i32, i32) {
    %c0_i32 = arith.constant 0 : i32
    %c0_i32_0 = arith.constant 0 : i32
    %c0_i32_1 = arith.constant 0 : i32
    return %c0_i32, %c0_i32_0 : i32, i32
  }
  func.func @transform_8(%arg0: i32) -> (i32, i32) {
    %c0_i32 = arith.constant 0 : i32
    %c0_i32_0 = arith.constant 0 : i32
    %c0_i32_1 = arith.constant 0 : i32
    return %c0_i32, %c0_i32_0 : i32, i32
  }
  func.func @transform_9(%arg0: i32) -> (i32, i32) {
    %c0_i32 = arith.constant 0 : i32
    %c0_i32_0 = arith.constant 0 : i32
    return %arg0, %c0_i32 : i32, i32
  }
}

</mosaic_0001>

<llo_original>
// kernel: fully_connected_forward.1
$region0: #{fully_connected_forward.1}
  #allocation0 [shape = 'u32[]', space=smem, size = 0x4, offset = 0x4, fixed_abs, tag = 'smem constant byte address 0x4 - core index']
  #allocation1 [shape = 'u32[144,128]{1,0:T(1,128)}', space=vmem, size = 0x12000, scoped, tag = 'internal scratch']
  %s0 = inlined_call_operand.vmem [shape: bf16[256,128], index: 0, kind: input, shape index: {}]
  %s1 = inlined_call_operand.vmem [shape: bf16[128,128], index: 1, kind: input, shape index: {}]
  %s2 = inlined_call_operand.vmem [shape: bf16[128,128], index: 2, kind: input, shape index: {}]
  %s3 = inlined_call_operand.vmem [shape: bf16[128,128], index: 3, kind: input, shape index: {}]
  %s4 = inlined_call_operand.vmem [shape: bf16[128,128], index: 4, kind: input, shape index: {}]
  %s5 = inlined_call_operand.vmem [shape: f32[1,128], index: 5, kind: input, shape index: {}]
  %s6 = inlined_call_operand.vmem [shape: f32[1,128], index: 6, kind: input, shape index: {}]
  %s7 = inlined_call_operand.vmem [shape: f32[1,128], index: 7, kind: input, shape index: {}]
  %s8 = inlined_call_operand.vmem [shape: f32[1,128], index: 8, kind: input, shape index: {}]
  %s9 = inlined_call_operand.vmem [shape: bf16[256,128], index: 9, kind: output, shape index: {}]
  %s10 = sld [smem:[#allocation0]]
  $region69: #{fully_connected_forward.1} parent=0
    _
  %s12 = ssub.s32 1, %s10
  %s13 = scalar_select 0, %s12, %s10
  loop: start=0, step=1, limit=6
  $region2: #{fully_connected_forward.1} parent=0 // loop_pre_header
    _
  $region3: #{fully_connected_forward.1} parent=0 // loop_header
    %s15 = sphi 0, %s19
    %p16 = scmp.ge.s32.totalorder %s15, 6
    %s25 = sphi 0, %s27
    %s28 = sphi 0, %s25
    %s29 = sphi 0, %s28
    %s45 = sphi 0, %s29
    %s49 = sphi 0, %s49
    %s51 = sphi 0, %s49
    %s52 = sphi 0, %s51
    %s66 = sphi 0, %s52
    %s70 = sphi 0, %s70
    %s72 = sphi 0, %s70
    %s73 = sphi 0, %s72
    %s87 = sphi 0, %s73
    %s91 = sphi 0, %s91
    %s93 = sphi 0, %s91
    %s94 = sphi 0, %s93
    %s108 = sphi 0, %s94
    %s112 = sphi 0, %s112
    %s114 = sphi 0, %s112
    %s115 = sphi 0, %s114
    %s129 = sphi 0, %s115
    %s133 = sphi 0, %s133
    %s135 = sphi 0, %s133
    %s136 = sphi 0, %s135
    %s150 = sphi 0, %s136
    %s154 = sphi 0, %s154
    %s156 = sphi 0, %s154
    %s157 = sphi 0, %s156
    %s171 = sphi 0, %s157
    %s175 = sphi 0, %s175
    %s177 = sphi 0, %s175
    %s178 = sphi 0, %s177
    %s192 = sphi 0, %s178
    %s196 = sphi 0, %s196
    %s198 = sphi 0, %s196
    %s199 = sphi 0, %s198
    %s213 = sphi 0, %s199
    %s219 = sphi 0, %s221
    %s222 = sphi 0, %s219
    %s223 = sphi 0, %s222
    %s239 = sphi 0, %s223
  $region4: #{fully_connected_forward.1} parent=0 // loop_header_branch
    %18 = sbr.rel (%p16) target = $region8
  $region5: #{fully_connected_forward.1} parent=0 // loop_body
    %s20 = ssub.s32 %s15, 1
    %s21 = ssub.s32 %s15, 2
    %s22 = sadd.s32 %s15, 1
    %s23 = ssub.s32 %s15, %s22
    %p24 = scmp.eq.s32.totalorder %s23, 0
    %s26 = sadd.s32 %s25, 1
    %s27 = scalar_select %p24, %s25, %s26
    %p30 = pneg %p24
    %p31 = scmp.eq.s32.totalorder %s15, 3
    %p32 = por %p30, %p31
    %p33 = scmp.ne.s32.totalorder %s25, %s28
    %p34 = scmp.eq.s32.totalorder %s15, 0
    %p35 = por %p33, %p34
    %p36 = scmp.ne.s32.totalorder %s25, %s28
    %p37 = scmp.eq.s32.totalorder %s20, 3
    %p38 = por %p36, %p37
    %p39 = scmp.ne.s32.totalorder %s28, %s29
    %p40 = scmp.eq.s32.totalorder %s20, 0
    %p41 = por %p39, %p40
    %p42 = scmp.ne.s32.totalorder %s28, %s29
    %p43 = scmp.eq.s32.totalorder %s21, 3
    %p44 = por %p42, %p43
    %p46 = scmp.ne.s32.totalorder %s29, %s45
    %p47 = scmp.eq.s32.totalorder %s21, 0
    %p48 = por %p46, %p47
    %s50 = sadd.s32 %s49, 1
    %p53 = scmp.eq.s32.totalorder %s15, 3
    %p54 = scmp.ne.s32.totalorder %s49, %s51
    %p55 = scmp.eq.s32.totalorder %s15, 0
    %p56 = por %p54, %p55
    %p57 = scmp.ne.s32.totalorder %s49, %s51
    %p58 = scmp.eq.s32.totalorder %s20, 3
    %p59 = por %p57, %p58
    %p60 = scmp.ne.s32.totalorder %s51, %s52
    %p61 = scmp.eq.s32.totalorder %s20, 0
    %p62 = por %p60, %p61
    %p63 = scmp.ne.s32.totalorder %s51, %s52
    %p64 = scmp.eq.s32.totalorder %s21, 3
    %p65 = por %p63, %p64
    %p67 = scmp.ne.s32.totalorder %s52, %s66
    %p68 = scmp.eq.s32.totalorder %s21, 0
    %p69 = por %p67, %p68
    %s71 = sadd.s32 %s70, 1
    %p74 = scmp.eq.s32.totalorder %s15, 3
    %p75 = scmp.ne.s32.totalorder %s70, %s72
    %p76 = scmp.eq.s32.totalorder %s15, 0
    %p77 = por %p75, %p76
    %p78 = scmp.ne.s32.totalorder %s70, %s72
    %p79 = scmp.eq.s32.totalorder %s20, 3
    %p80 = por %p78, %p79
    %p81 = scmp.ne.s32.totalorder %s72, %s73
    %p82 = scmp.eq.s32.totalorder %s20, 0
    %p83 = por %p81, %p82
    %p84 = scmp.ne.s32.totalorder %s72, %s73
    %p85 = scmp.eq.s32.totalorder %s21, 3
    %p86 = por %p84, %p85
    %p88 = scmp.ne.s32.totalorder %s73, %s87
    %p89 = scmp.eq.s32.totalorder %s21, 0
    %p90 = por %p88, %p89
    %s92 = sadd.s32 %s91, 1
    %p95 = scmp.eq.s32.totalorder %s15, 3
    %p96 = scmp.ne.s32.totalorder %s91, %s93
    %p97 = scmp.eq.s32.totalorder %s15, 0
    %p98 = por %p96, %p97
    %p99 = scmp.ne.s32.totalorder %s91, %s93
    %p100 = scmp.eq.s32.totalorder %s20, 3
    %p101 = por %p99, %p100
    %p102 = scmp.ne.s32.totalorder %s93, %s94
    %p103 = scmp.eq.s32.totalorder %s20, 0
    %p104 = por %p102, %p103
    %p105 = scmp.ne.s32.totalorder %s93, %s94
    %p106 = scmp.eq.s32.totalorder %s21, 3
    %p107 = por %p105, %p106
    %p109 = scmp.ne.s32.totalorder %s94, %s108
    %p110 = scmp.eq.s32.totalorder %s21, 0
    %p111 = por %p109, %p110
    %s113 = sadd.s32 %s112, 1
    %p116 = scmp.eq.s32.totalorder %s15, 3
    %p117 = scmp.ne.s32.totalorder %s112, %s114
    %p118 = scmp.eq.s32.totalorder %s15, 0
    %p119 = por %p117, %p118
    %p120 = scmp.ne.s32.totalorder %s112, %s114
    %p121 = scmp.eq.s32.totalorder %s20, 3
    %p122 = por %p120, %p121
    %p123 = scmp.ne.s32.totalorder %s114, %s115
    %p124 = scmp.eq.s32.totalorder %s20, 0
    %p125 = por %p123, %p124
    %p126 = scmp.ne.s32.totalorder %s114, %s115
    %p127 = scmp.eq.s32.totalorder %s21, 3
    %p128 = por %p126, %p127
    %p130 = scmp.ne.s32.totalorder %s115, %s129
    %p131 = scmp.eq.s32.totalorder %s21, 0
    %p132 = por %p130, %p131
    %s134 = sadd.s32 %s133, 1
    %p137 = scmp.eq.s32.totalorder %s15, 3
    %p138 = scmp.ne.s32.totalorder %s133, %s135
    %p139 = scmp.eq.s32.totalorder %s15, 0
    %p140 = por %p138, %p139
    %p141 = scmp.ne.s32.totalorder %s133, %s135
    %p142 = scmp.eq.s32.totalorder %s20, 3
    %p143 = por %p141, %p142
    %p144 = scmp.ne.s32.totalorder %s135, %s136
    %p145 = scmp.eq.s32.totalorder %s20, 0
    %p146 = por %p144, %p145
    %p147 = scmp.ne.s32.totalorder %s135, %s136
    %p148 = scmp.eq.s32.totalorder %s21, 3
    %p149 = por %p147, %p148
    %p151 = scmp.ne.s32.totalorder %s136, %s150
    %p152 = scmp.eq.s32.totalorder %s21, 0
    %p153 = por %p151, %p152
    %s155 = sadd.s32 %s154, 1
    %p158 = scmp.eq.s32.totalorder %s15, 3
    %p159 = scmp.ne.s32.totalorder %s154, %s156
    %p160 = scmp.eq.s32.totalorder %s15, 0
    %p161 = por %p159, %p160
    %p162 = scmp.ne.s32.totalorder %s154, %s156
    %p163 = scmp.eq.s32.totalorder %s20, 3
    %p164 = por %p162, %p163
    %p165 = scmp.ne.s32.totalorder %s156, %s157
    %p166 = scmp.eq.s32.totalorder %s20, 0
    %p167 = por %p165, %p166
    %p168 = scmp.ne.s32.totalorder %s156, %s157
    %p169 = scmp.eq.s32.totalorder %s21, 3
    %p170 = por %p168, %p169
    %p172 = scmp.ne.s32.totalorder %s157, %s171
    %p173 = scmp.eq.s32.totalorder %s21, 0
    %p174 = por %p172, %p173
    %s176 = sadd.s32 %s175, 1
    %p179 = scmp.eq.s32.totalorder %s15, 3
    %p180 = scmp.ne.s32.totalorder %s175, %s177
    %p181 = scmp.eq.s32.totalorder %s15, 0
    %p182 = por %p180, %p181
    %p183 = scmp.ne.s32.totalorder %s175, %s177
    %p184 = scmp.eq.s32.totalorder %s20, 3
    %p185 = por %p183, %p184
    %p186 = scmp.ne.s32.totalorder %s177, %s178
    %p187 = scmp.eq.s32.totalorder %s20, 0
    %p188 = por %p186, %p187
    %p189 = scmp.ne.s32.totalorder %s177, %s178
    %p190 = scmp.eq.s32.totalorder %s21, 3
    %p191 = por %p189, %p190
    %p193 = scmp.ne.s32.totalorder %s178, %s192
    %p194 = scmp.eq.s32.totalorder %s21, 0
    %p195 = por %p193, %p194
    %s197 = sadd.s32 %s196, 1
    %p200 = scmp.eq.s32.totalorder %s15, 3
    %p201 = scmp.ne.s32.totalorder %s196, %s198
    %p202 = scmp.eq.s32.totalorder %s15, 0
    %p203 = por %p201, %p202
    %p204 = scmp.ne.s32.totalorder %s196, %s198
    %p205 = scmp.eq.s32.totalorder %s20, 3
    %p206 = por %p204, %p205
    %p207 = scmp.ne.s32.totalorder %s198, %s199
    %p208 = scmp.eq.s32.totalorder %s20, 0
    %p209 = por %p207, %p208
    %p210 = scmp.ne.s32.totalorder %s198, %s199
    %p211 = scmp.eq.s32.totalorder %s21, 3
    %p212 = por %p210, %p211
    %p214 = scmp.ne.s32.totalorder %s199, %s213
    %p215 = scmp.eq.s32.totalorder %s21, 0
    %p216 = por %p214, %p215
    %s217 = ssub.s32 %s15, %s22
    %p218 = scmp.eq.s32.totalorder %s217, 0
    %s220 = sadd.s32 %s219, 1
    %s221 = scalar_select %p218, %s219, %s220
    %p224 = pneg %p218
    %p225 = scmp.eq.s32.totalorder %s15, 3
    %p226 = por %p224, %p225
    %p227 = scmp.ne.s32.totalorder %s219, %s222
    %p228 = scmp.eq.s32.totalorder %s15, 0
    %p229 = por %p227, %p228
    %p230 = scmp.ne.s32.totalorder %s219, %s222
    %p231 = scmp.eq.s32.totalorder %s20, 3
    %p232 = por %p230, %p231
    %p233 = scmp.ne.s32.totalorder %s222, %s223
    %p234 = scmp.eq.s32.totalorder %s20, 0
    %p235 = por %p233, %p234
    %p236 = scmp.ne.s32.totalorder %s222, %s223
    %p237 = scmp.eq.s32.totalorder %s21, 3
    %p238 = por %p236, %p237
    %p240 = scmp.ne.s32.totalorder %s223, %s239
    %p241 = scmp.eq.s32.totalorder %s21, 0
    %p242 = por %p240, %p241
    %p243 = scmp.le.s32.totalorder 1, %s15
    %p244 = scmp.lt.s32.totalorder %s15, 5
    %p245 = pnand %p243, %p244
    %p246 = pneg %p245
    // Predicated region
    $region9: #{fully_connected_forward.1} parent=5 // pred_check
      _
    $region10: #{fully_connected_forward.1} parent=5 // pred_check_branch
      %248 = sbr.rel (%p245) target = $region12
    $region11: #{fully_connected_forward.1} parent=5 // pred_region
      %s249 = ssub.s32 %s15, 1
      // Predicated region
      $region13: #{fully_connected_forward.1} parent=11 // pred_check
        %p250 = pneg %p62
      $region14: #{fully_connected_forward.1} parent=11 // pred_check_branch
        %252 = sbr.rel (%p250) target = $region16
      $region15: #{fully_connected_forward.1} parent=11 // pred_region
        _
      $region16: #{fully_connected_forward.1} parent=11 // pred_fallthru
        _
      // Predicated region
      $region17: #{fully_connected_forward.1} parent=11 // pred_check
        %p253 = pneg %p83
      $region18: #{fully_connected_forward.1} parent=11 // pred_check_branch
        %255 = sbr.rel (%p253) target = $region20
      $region19: #{fully_connected_forward.1} parent=11 // pred_region
        _
      $region20: #{fully_connected_forward.1} parent=11 // pred_fallthru
        _
      // Predicated region
      $region21: #{fully_connected_forward.1} parent=11 // pred_check
        %p256 = pneg %p104
      $region22: #{fully_connected_forward.1} parent=11 // pred_check_branch
        %258 = sbr.rel (%p256) target = $region24
      $region23: #{fully_connected_forward.1} parent=11 // pred_region
        _
      $region24: #{fully_connected_forward.1} parent=11 // pred_fallthru
        _
      // Predicated region
      $region25: #{fully_connected_forward.1} parent=11 // pred_check
        %p259 = pneg %p125
      $region26: #{fully_connected_forward.1} parent=11 // pred_check_branch
        %261 = sbr.rel (%p259) target = $region28
      $region27: #{fully_connected_forward.1} parent=11 // pred_region
        _
      $region28: #{fully_connected_forward.1} parent=11 // pred_fallthru
        _
      // Predicated region
      $region29: #{fully_connected_forward.1} parent=11 // pred_check
        %p262 = pneg %p146
      $region30: #{fully_connected_forward.1} parent=11 // pred_check_branch
        %264 = sbr.rel (%p262) target = $region32
      $region31: #{fully_connected_forward.1} parent=11 // pred_region
        _
      $region32: #{fully_connected_forward.1} parent=11 // pred_fallthru
        _
      // Predicated region
      $region33: #{fully_connected_forward.1} parent=11 // pred_check
        %p265 = pneg %p167
      $region34: #{fully_connected_forward.1} parent=11 // pred_check_branch
        %267 = sbr.rel (%p265) target = $region36
      $region35: #{fully_connected_forward.1} parent=11 // pred_region
        _
      $region36: #{fully_connected_forward.1} parent=11 // pred_fallthru
        _
      // Predicated region
      $region37: #{fully_connected_forward.1} parent=11 // pred_check
        %p268 = pneg %p188
      $region38: #{fully_connected_forward.1} parent=11 // pred_check_branch
        %270 = sbr.rel (%p268) target = $region40
      $region39: #{fully_connected_forward.1} parent=11 // pred_region
        _
      $region40: #{fully_connected_forward.1} parent=11 // pred_fallthru
        _
      // Predicated region
      $region41: #{fully_connected_forward.1} parent=11 // pred_check
        %p271 = pneg %p209
      $region42: #{fully_connected_forward.1} parent=11 // pred_check_branch
        %273 = sbr.rel (%p271) target = $region44
      $region43: #{fully_connected_forward.1} parent=11 // pred_region
        _
      $region44: #{fully_connected_forward.1} parent=11 // pred_fallthru
        _
    $region12: #{fully_connected_forward.1} parent=5 // pred_fallthru
      _
    %p274 = scmp.lt.s32.totalorder %s15, 4
    // Predicated region
    $region45: #{fully_connected_forward.1} parent=5 // pred_check
      %p275 = pneg %p274
    $region46: #{fully_connected_forward.1} parent=5 // pred_check_branch
      %277 = sbr.rel (%p275) target = $region48
    $region47: #{fully_connected_forward.1} parent=5 // pred_region
      // Predicated region
      $region49: #{fully_connected_forward.1} parent=47 // pred_check
        %p278 = pneg %p35
      $region50: #{fully_connected_forward.1} parent=47 // pred_check_branch
        %280 = sbr.rel (%p278) target = $region52
      $region51: #{fully_connected_forward.1} parent=47 // pred_region
        %s281 = smul.u32 8, %s15
        %p282 = scmp.lt.s32.totalorder %s281, 31
        %s283 = scalar_select %p282, %s281, 31
        %s284 = smul.addr %s283, 4
        %s285 = scalar_lea.vmem %s0, %s284
        %s286 = smul.u32 8, %s15
      $region52: #{fully_connected_forward.1} parent=47 // pred_fallthru
        _
    $region48: #{fully_connected_forward.1} parent=5 // pred_fallthru
      _
    %p287 = scmp.le.s32.totalorder 1, %s15
    %p288 = scmp.lt.s32.totalorder %s15, 5
    %p289 = pnand %p287, %p288
    %p290 = pneg %p289
    // Predicated region
    $region53: #{fully_connected_forward.1} parent=5 // pred_check
      _
    $region54: #{fully_connected_forward.1} parent=5 // pred_check_branch
      %292 = sbr.rel (%p289) target = $region56
    $region55: #{fully_connected_forward.1} parent=5 // pred_region
      %s293 = ssub.s32 %s15, 1
      %s294 = smul.u32 8, %s20
      %p295 = scmp.lt.s32.totalorder %s294, 31
      %s296 = scalar_select %p295, %s294, 31
      %s297 = smul.addr %s296, 4
      %s298 = scalar_lea.vmem %s0, %s297
      %p299 = pneg %p41
      %p300 = pneg %p38
      %p301 = pneg %p62
      %p302 = pneg %p59
      %p303 = pneg %p83
      %p304 = pneg %p80
      %p305 = pneg %p104
      %p306 = pneg %p101
      %p307 = pneg %p125
      %p308 = pneg %p122
      %p309 = pneg %p146
      %p310 = pneg %p143
      %p311 = pneg %p167
      %p312 = pneg %p164
      %p313 = pneg %p188
      %p314 = pneg %p185
      %p315 = pneg %p209
      %p316 = pneg %p206
      %p317 = pneg %p235
      %p318 = pneg %p232
      %s319 = smul.u32 8, %s20
      %p320 = scmp.lt.s32.totalorder %s319, 31
      %s321 = scalar_select %p320, %s319, 31
      %s322 = smul.addr %s321, 4
      %s323 = scalar_lea.vmem %s9, %s322
      %s324 = smul.u32 8, %s20
      %p325 = scmp.lt.s32.totalorder %s324, 31
      %s326 = scalar_select %p325, %s324, 31
      %s327 = smul.addr %s326, 4
      %s328 = scalar_lea.vmem %s0, %s327
      %s329 = smul.u32 8, %s20
      %s330 = smul.u32 8, %s20
      %p331 = scmp.lt.s32.totalorder %s330, 31
      %s332 = scalar_select %p331, %s330, 31
      %s333 = smul.addr %s332, 4
      %s334 = scalar_lea.vmem %s9, %s333
      %s335 = smul.u32 8, %s20
      %v337 = vld [vmem:[%s328] sm:$0xf]
      %v338 = vld [vmem:[%s328 + $0x4] sm:$0xf]
      %v339 = vld [vmem:[%s328 + $0x8] sm:$0xf]
      %v340 = vld [vmem:[%s328 + $0xc] sm:$0xf]
      %v341 = vld [vmem:[%s328 + $0x10] sm:$0xf]
      %v342 = vld [vmem:[%s328 + $0x14] sm:$0xf]
      %v343 = vld [vmem:[%s328 + $0x18] sm:$0xf]
      %v344 = vld [vmem:[%s328 + $0x1c] sm:$0xf]
      %v345 = vld [vmem:[%s1] sm:$0xf]
      %v346 = vld [vmem:[%s1 + $0x4] sm:$0xf]
      %v347 = vld [vmem:[%s1 + $0x8] sm:$0xf]
      %v348 = vld [vmem:[%s1 + $0xc] sm:$0xf]
      %v349 = vld [vmem:[%s1 + $0x10] sm:$0xf]
      %v350 = vld [vmem:[%s1 + $0x14] sm:$0xf]
      %v351 = vld [vmem:[%s1 + $0x18] sm:$0xf]
      %v352 = vld [vmem:[%s1 + $0x1c] sm:$0xf]
      %v353 = vld [vmem:[%s1 + $0x20] sm:$0xf]
      %v354 = vld [vmem:[%s1 + $0x24] sm:$0xf]
      %v355 = vld [vmem:[%s1 + $0x28] sm:$0xf]
      %v356 = vld [vmem:[%s1 + $0x2c] sm:$0xf]
      %v357 = vld [vmem:[%s1 + $0x30] sm:$0xf]
      %v358 = vld [vmem:[%s1 + $0x34] sm:$0xf]
      %v359 = vld [vmem:[%s1 + $0x38] sm:$0xf]
      %v360 = vld [vmem:[%s1 + $0x3c] sm:$0xf]
      %v361 = vld [vmem:[%s5] sm:$0x1]
      %v363 = vlaneseq
      %v364 = vshrl.u32 %v363, 7
      %v365 = vsub.s32 0, %v364
      %v366 = vrot.slane %v361, %v365
      %v376 = vunpack.c.l.b16 %v337
      %v377 = vunpack.c.l.b16 %v338
      %v378 = vunpack.c.l.b16 %v339
      %v379 = vunpack.c.l.b16 %v340
      %v380 = vunpack.c.l.b16 %v341
      %v381 = vunpack.c.l.b16 %v342
      %v382 = vunpack.c.l.b16 %v343
      %v383 = vunpack.c.l.b16 %v344
      %v384 = vpack.c.b16 %v377, %v376
      %v385 = vpack.c.b16 %v379, %v378
      %v386 = vpack.c.b16 %v381, %v380
      %v387 = vpack.c.b16 %v383, %v382
      %v408 = vunpack.c.l.b16 %v345
      %v409 = vunpack.c.l.b16 %v346
      %v410 = vunpack.c.l.b16 %v347
      %v411 = vunpack.c.l.b16 %v348
      %v412 = vunpack.c.l.b16 %v349
      %v413 = vunpack.c.l.b16 %v350
      %v414 = vunpack.c.l.b16 %v351
      %v415 = vunpack.c.l.b16 %v352
      %v416 = vunpack.c.l.b16 %v353
      %v417 = vunpack.c.l.b16 %v354
      %v418 = vunpack.c.l.b16 %v355
      %v419 = vunpack.c.l.b16 %v356
      %v420 = vunpack.c.l.b16 %v357
      %v421 = vunpack.c.l.b16 %v358
      %v422 = vunpack.c.l.b16 %v359
      %v423 = vunpack.c.l.b16 %v360
      %v424 = vpack.c.b16 %v409, %v408
      %v425 = vpack.c.b16 %v411, %v410
      %v426 = vpack.c.b16 %v413, %v412
      %v427 = vpack.c.b16 %v415, %v414
      %v428 = vpack.c.b16 %v417, %v416
      %v429 = vpack.c.b16 %v419, %v418
      %v430 = vpack.c.b16 %v421, %v420
      %v431 = vpack.c.b16 %v423, %v422
      %440 = vmatprep.subr.bf16.mxu0 0
      %441 = vmatpush1.bf16.msra.mxu0 %v431
      %442 = vmatprep.subr.bf16.mxu0 0
      %443 = vmatpush1.bf16.msra.mxu0 %v430
      %444 = vmatprep.subr.bf16.mxu0 0
      %445 = vmatpush1.bf16.msra.mxu0 %v429
      %446 = vmatprep.subr.bf16.mxu0 0
      %447 = vmatpush1.bf16.msra.mxu0 %v428
      %448 = vmatprep.subr.bf16.mxu0 0
      %449 = vmatpush1.bf16.msra.mxu0 %v427
      %450 = vmatprep.subr.bf16.mxu0 0
      %451 = vmatpush1.bf16.msra.mxu0 %v426
      %452 = vmatprep.subr.bf16.mxu0 0
      %453 = vmatpush1.bf16.msra.mxu0 %v425
      %454 = vmatprep.subr.bf16.mxu0 0
      %455 = vmatpush1.bf16.msra.mxu0 %v424
      %456 = vmatprep.subr.bf16.mxu0 0
      %457 = vmatpush2.bf16.msra.mxu0 0
      %458 = vmatprep.subr.bf16.mxu0 0
      %459 = vmatpush2.bf16.msra.mxu0 0
      %460 = vmatprep.subr.bf16.mxu0 0
      %461 = vmatpush2.bf16.msra.mxu0 0
      %462 = vmatprep.subr.bf16.mxu0 0
      %463 = vmatpush2.bf16.msra.mxu0 0
      %464 = vmatprep.subr.bf16.mxu0 0
      %465 = vmatpush2.bf16.msra.mxu0 0
      %466 = vmatprep.subr.bf16.mxu0 0
      %467 = vmatpush2.bf16.msra.mxu0 0
      %468 = vmatprep.subr.bf16.mxu0 0
      %469 = vmatpush2.bf16.msra.mxu0 0
      %470 = vmatprep.subr.bf16.mxu0 0
      %471 = vmatpush2.bf16.msra.mxu0 0
      %472 = vmatprep.mubr.bf16.mxu0 0
      %473 = vmatmul.mubr.bf16.gmra.mxu0 %v384
      %v474 = vpop.f32.mrf.mxu0
      %v475 = vadd.f32 %v366, %v474
      %v476 = vpop.f32.mrf.mxu0
      %v477 = vpop.f32.mrf.mxu0
      %v478 = vadd.f32 %v366, %v477
      %v479 = vpop.f32.mrf.mxu0
      %480 = vmatprep.mubr.bf16.mxu0 0
      %481 = vmatmul.mubr.bf16.gmra.mxu0 %v385
      %v482 = vpop.f32.mrf.mxu0
      %v483 = vadd.f32 %v366, %v482
      %v484 = vpop.f32.mrf.mxu0
      %v485 = vpop.f32.mrf.mxu0
      %v486 = vadd.f32 %v366, %v485
      %v487 = vpop.f32.mrf.mxu0
      %488 = vmatprep.mubr.bf16.mxu0 0
      %489 = vmatmul.mubr.bf16.gmra.mxu0 %v386
      %v490 = vpop.f32.mrf.mxu0
      %v491 = vadd.f32 %v366, %v490
      %v492 = vpop.f32.mrf.mxu0
      %v493 = vpop.f32.mrf.mxu0
      %v494 = vadd.f32 %v366, %v493
      %v495 = vpop.f32.mrf.mxu0
      %496 = vmatprep.mubr.bf16.mxu0 0
      %497 = vmatmul.mubr.bf16.gmra.mxu0 %v387
      %v498 = vpop.f32.mrf.mxu0
      %v499 = vadd.f32 %v366, %v498
      %v500 = vpop.f32.mrf.mxu0
      %v501 = vpop.f32.mrf.mxu0
      %v502 = vadd.f32 %v366, %v501
      %v503 = vpop.f32.mrf.mxu0
      %504 = vdwg.mxu0
      %v505 = vmax.f32 %v475, 0.0
      %v506 = vmax.f32 %v478, 0.0
      %v507 = vmax.f32 %v483, 0.0
      %v508 = vmax.f32 %v486, 0.0
      %v509 = vmax.f32 %v491, 0.0
      %v510 = vmax.f32 %v494, 0.0
      %v511 = vmax.f32 %v499, 0.0
      %v512 = vmax.f32 %v502, 0.0
      %v513 = vpack.c.bf16 %v506, %v505
      %v514 = vpack.c.bf16 %v508, %v507
      %v515 = vpack.c.bf16 %v510, %v509
      %v516 = vpack.c.bf16 %v512, %v511
      %v517 = vld [vmem:[%s2] sm:$0xf]
      %v518 = vld [vmem:[%s2 + $0x4] sm:$0xf]
      %v519 = vld [vmem:[%s2 + $0x8] sm:$0xf]
      %v520 = vld [vmem:[%s2 + $0xc] sm:$0xf]
      %v521 = vld [vmem:[%s2 + $0x10] sm:$0xf]
      %v522 = vld [vmem:[%s2 + $0x14] sm:$0xf]
      %v523 = vld [vmem:[%s2 + $0x18] sm:$0xf]
      %v524 = vld [vmem:[%s2 + $0x1c] sm:$0xf]
      %v525 = vld [vmem:[%s2 + $0x20] sm:$0xf]
      %v526 = vld [vmem:[%s2 + $0x24] sm:$0xf]
      %v527 = vld [vmem:[%s2 + $0x28] sm:$0xf]
      %v528 = vld [vmem:[%s2 + $0x2c] sm:$0xf]
      %v529 = vld [vmem:[%s2 + $0x30] sm:$0xf]
      %v530 = vld [vmem:[%s2 + $0x34] sm:$0xf]
      %v531 = vld [vmem:[%s2 + $0x38] sm:$0xf]
      %v532 = vld [vmem:[%s2 + $0x3c] sm:$0xf]
      %v533 = vld [vmem:[%s6] sm:$0x1]
      %v535 = vlaneseq
      %v536 = vshrl.u32 %v535, 7
      %v537 = vsub.s32 0, %v536
      %v538 = vrot.slane %v533, %v537
      %v556 = vunpack.c.l.b16 %v517
      %v557 = vunpack.c.l.b16 %v518
      %v558 = vunpack.c.l.b16 %v519
      %v559 = vunpack.c.l.b16 %v520
      %v560 = vunpack.c.l.b16 %v521
      %v561 = vunpack.c.l.b16 %v522
      %v562 = vunpack.c.l.b16 %v523
      %v563 = vunpack.c.l.b16 %v524
      %v564 = vunpack.c.l.b16 %v525
      %v565 = vunpack.c.l.b16 %v526
      %v566 = vunpack.c.l.b16 %v527
      %v567 = vunpack.c.l.b16 %v528
      %v568 = vunpack.c.l.b16 %v529
      %v569 = vunpack.c.l.b16 %v530
      %v570 = vunpack.c.l.b16 %v531
      %v571 = vunpack.c.l.b16 %v532
      %v572 = vpack.c.b16 %v557, %v556
      %v573 = vpack.c.b16 %v559, %v558
      %v574 = vpack.c.b16 %v561, %v560
      %v575 = vpack.c.b16 %v563, %v562
      %v576 = vpack.c.b16 %v565, %v564
      %v577 = vpack.c.b16 %v567, %v566
      %v578 = vpack.c.b16 %v569, %v568
      %v579 = vpack.c.b16 %v571, %v570
      %588 = vmatprep.subr.bf16.mxu0 0
      %589 = vmatpush1.bf16.msra.mxu0 %v579
      %590 = vmatprep.subr.bf16.mxu0 0
      %591 = vmatpush1.bf16.msra.mxu0 %v578
      %592 = vmatprep.subr.bf16.mxu0 0
      %593 = vmatpush1.bf16.msra.mxu0 %v577
      %594 = vmatprep.subr.bf16.mxu0 0
      %595 = vmatpush1.bf16.msra.mxu0 %v576
      %596 = vmatprep.subr.bf16.mxu0 0
      %597 = vmatpush1.bf16.msra.mxu0 %v575
      %598 = vmatprep.subr.bf16.mxu0 0
      %599 = vmatpush1.bf16.msra.mxu0 %v574
      %600 = vmatprep.subr.bf16.mxu0 0
      %601 = vmatpush1.bf16.msra.mxu0 %v573
      %602 = vmatprep.subr.bf16.mxu0 0
      %603 = vmatpush1.bf16.msra.mxu0 %v572
      %604 = vmatprep.subr.bf16.mxu0 0
      %605 = vmatpush2.bf16.msra.mxu0 0
      %606 = vmatprep.subr.bf16.mxu0 0
      %607 = vmatpush2.bf16.msra.mxu0 0
      %608 = vmatprep.subr.bf16.mxu0 0
      %609 = vmatpush2.bf16.msra.mxu0 0
      %610 = vmatprep.subr.bf16.mxu0 0
      %611 = vmatpush2.bf16.msra.mxu0 0
      %612 = vmatprep.subr.bf16.mxu0 0
      %613 = vmatpush2.bf16.msra.mxu0 0
      %614 = vmatprep.subr.bf16.mxu0 0
      %615 = vmatpush2.bf16.msra.mxu0 0
      %616 = vmatprep.subr.bf16.mxu0 0
      %617 = vmatpush2.bf16.msra.mxu0 0
      %618 = vmatprep.subr.bf16.mxu0 0
      %619 = vmatpush2.bf16.msra.mxu0 0
      %620 = vmatprep.mubr.bf16.mxu0 0
      %621 = vmatmul.mubr.bf16.gmra.mxu0 %v513
      %v622 = vpop.f32.mrf.mxu0
      %v623 = vadd.f32 %v538, %v622
      %v624 = vpop.f32.mrf.mxu0
      %v625 = vpop.f32.mrf.mxu0
      %v626 = vadd.f32 %v538, %v625
      %v627 = vpop.f32.mrf.mxu0
      %628 = vmatprep.mubr.bf16.mxu0 0
      %629 = vmatmul.mubr.bf16.gmra.mxu0 %v514
      %v630 = vpop.f32.mrf.mxu0
      %v631 = vadd.f32 %v538, %v630
      %v632 = vpop.f32.mrf.mxu0
      %v633 = vpop.f32.mrf.mxu0
      %v634 = vadd.f32 %v538, %v633
      %v635 = vpop.f32.mrf.mxu0
      %636 = vmatprep.mubr.bf16.mxu0 0
      %637 = vmatmul.mubr.bf16.gmra.mxu0 %v515
      %v638 = vpop.f32.mrf.mxu0
      %v639 = vadd.f32 %v538, %v638
      %v640 = vpop.f32.mrf.mxu0
      %v641 = vpop.f32.mrf.mxu0
      %v642 = vadd.f32 %v538, %v641
      %v643 = vpop.f32.mrf.mxu0
      %644 = vmatprep.mubr.bf16.mxu0 0
      %645 = vmatmul.mubr.bf16.gmra.mxu0 %v516
      %v646 = vpop.f32.mrf.mxu0
      %v647 = vadd.f32 %v538, %v646
      %v648 = vpop.f32.mrf.mxu0
      %v649 = vpop.f32.mrf.mxu0
      %v650 = vadd.f32 %v538, %v649
      %v651 = vpop.f32.mrf.mxu0
      %652 = vdwg.mxu0
      %v653 = vmax.f32 %v623, 0.0
      %v654 = vmax.f32 %v626, 0.0
      %v655 = vmax.f32 %v631, 0.0
      %v656 = vmax.f32 %v634, 0.0
      %v657 = vmax.f32 %v639, 0.0
      %v658 = vmax.f32 %v642, 0.0
      %v659 = vmax.f32 %v647, 0.0
      %v660 = vmax.f32 %v650, 0.0
      %v661 = vpack.c.bf16 %v654, %v653
      %v662 = vpack.c.bf16 %v656, %v655
      %v663 = vpack.c.bf16 %v658, %v657
      %v664 = vpack.c.bf16 %v660, %v659
      %v665 = vld [vmem:[%s3] sm:$0xf]
      %v666 = vld [vmem:[%s3 + $0x4] sm:$0xf]
      %v667 = vld [vmem:[%s3 + $0x8] sm:$0xf]
      %v668 = vld [vmem:[%s3 + $0xc] sm:$0xf]
      %v669 = vld [vmem:[%s3 + $0x10] sm:$0xf]
      %v670 = vld [vmem:[%s3 + $0x14] sm:$0xf]
      %v671 = vld [vmem:[%s3 + $0x18] sm:$0xf]
      %v672 = vld [vmem:[%s3 + $0x1c] sm:$0xf]
      %v673 = vld [vmem:[%s3 + $0x20] sm:$0xf]
      %v674 = vld [vmem:[%s3 + $0x24] sm:$0xf]
      %v675 = vld [vmem:[%s3 + $0x28] sm:$0xf]
      %v676 = vld [vmem:[%s3 + $0x2c] sm:$0xf]
      %v677 = vld [vmem:[%s3 + $0x30] sm:$0xf]
      %v678 = vld [vmem:[%s3 + $0x34] sm:$0xf]
      %v679 = vld [vmem:[%s3 + $0x38] sm:$0xf]
      %v680 = vld [vmem:[%s3 + $0x3c] sm:$0xf]
      %v681 = vld [vmem:[%s7] sm:$0x1]
      %v683 = vlaneseq
      %v684 = vshrl.u32 %v683, 7
      %v685 = vsub.s32 0, %v684
      %v686 = vrot.slane %v681, %v685
      %v704 = vunpack.c.l.b16 %v665
      %v705 = vunpack.c.l.b16 %v666
      %v706 = vunpack.c.l.b16 %v667
      %v707 = vunpack.c.l.b16 %v668
      %v708 = vunpack.c.l.b16 %v669
      %v709 = vunpack.c.l.b16 %v670
      %v710 = vunpack.c.l.b16 %v671
      %v711 = vunpack.c.l.b16 %v672
      %v712 = vunpack.c.l.b16 %v673
      %v713 = vunpack.c.l.b16 %v674
      %v714 = vunpack.c.l.b16 %v675
      %v715 = vunpack.c.l.b16 %v676
      %v716 = vunpack.c.l.b16 %v677
      %v717 = vunpack.c.l.b16 %v678
      %v718 = vunpack.c.l.b16 %v679
      %v719 = vunpack.c.l.b16 %v680
      %v720 = vpack.c.b16 %v705, %v704
      %v721 = vpack.c.b16 %v707, %v706
      %v722 = vpack.c.b16 %v709, %v708
      %v723 = vpack.c.b16 %v711, %v710
      %v724 = vpack.c.b16 %v713, %v712
      %v725 = vpack.c.b16 %v715, %v714
      %v726 = vpack.c.b16 %v717, %v716
      %v727 = vpack.c.b16 %v719, %v718
      %736 = vmatprep.subr.bf16.mxu0 0
      %737 = vmatpush1.bf16.msra.mxu0 %v727
      %738 = vmatprep.subr.bf16.mxu0 0
      %739 = vmatpush1.bf16.msra.mxu0 %v726
      %740 = vmatprep.subr.bf16.mxu0 0
      %741 = vmatpush1.bf16.msra.mxu0 %v725
      %742 = vmatprep.subr.bf16.mxu0 0
      %743 = vmatpush1.bf16.msra.mxu0 %v724
      %744 = vmatprep.subr.bf16.mxu0 0
      %745 = vmatpush1.bf16.msra.mxu0 %v723
      %746 = vmatprep.subr.bf16.mxu0 0
      %747 = vmatpush1.bf16.msra.mxu0 %v722
      %748 = vmatprep.subr.bf16.mxu0 0
      %749 = vmatpush1.bf16.msra.mxu0 %v721
      %750 = vmatprep.subr.bf16.mxu0 0
      %751 = vmatpush1.bf16.msra.mxu0 %v720
      %752 = vmatprep.subr.bf16.mxu0 0
      %753 = vmatpush2.bf16.msra.mxu0 0
      %754 = vmatprep.subr.bf16.mxu0 0
      %755 = vmatpush2.bf16.msra.mxu0 0
      %756 = vmatprep.subr.bf16.mxu0 0
      %757 = vmatpush2.bf16.msra.mxu0 0
      %758 = vmatprep.subr.bf16.mxu0 0
      %759 = vmatpush2.bf16.msra.mxu0 0
      %760 = vmatprep.subr.bf16.mxu0 0
      %761 = vmatpush2.bf16.msra.mxu0 0
      %762 = vmatprep.subr.bf16.mxu0 0
      %763 = vmatpush2.bf16.msra.mxu0 0
      %764 = vmatprep.subr.bf16.mxu0 0
      %765 = vmatpush2.bf16.msra.mxu0 0
      %766 = vmatprep.subr.bf16.mxu0 0
      %767 = vmatpush2.bf16.msra.mxu0 0
      %768 = vmatprep.mubr.bf16.mxu0 0
      %769 = vmatmul.mubr.bf16.gmra.mxu0 %v661
      %v770 = vpop.f32.mrf.mxu0
      %v771 = vadd.f32 %v686, %v770
      %v772 = vpop.f32.mrf.mxu0
      %v773 = vpop.f32.mrf.mxu0
      %v774 = vadd.f32 %v686, %v773
      %v775 = vpop.f32.mrf.mxu0
      %776 = vmatprep.mubr.bf16.mxu0 0
      %777 = vmatmul.mubr.bf16.gmra.mxu0 %v662
      %v778 = vpop.f32.mrf.mxu0
      %v779 = vadd.f32 %v686, %v778
      %v780 = vpop.f32.mrf.mxu0
      %v781 = vpop.f32.mrf.mxu0
      %v782 = vadd.f32 %v686, %v781
      %v783 = vpop.f32.mrf.mxu0
      %784 = vmatprep.mubr.bf16.mxu0 0
      %785 = vmatmul.mubr.bf16.gmra.mxu0 %v663
      %v786 = vpop.f32.mrf.mxu0
      %v787 = vadd.f32 %v686, %v786
      %v788 = vpop.f32.mrf.mxu0
      %v789 = vpop.f32.mrf.mxu0
      %v790 = vadd.f32 %v686, %v789
      %v791 = vpop.f32.mrf.mxu0
      %792 = vmatprep.mubr.bf16.mxu0 0
      %793 = vmatmul.mubr.bf16.gmra.mxu0 %v664
      %v794 = vpop.f32.mrf.mxu0
      %v795 = vadd.f32 %v686, %v794
      %v796 = vpop.f32.mrf.mxu0
      %v797 = vpop.f32.mrf.mxu0
      %v798 = vadd.f32 %v686, %v797
      %v799 = vpop.f32.mrf.mxu0
      %800 = vdwg.mxu0
      %v801 = vmax.f32 %v771, 0.0
      %v802 = vmax.f32 %v774, 0.0
      %v803 = vmax.f32 %v779, 0.0
      %v804 = vmax.f32 %v782, 0.0
      %v805 = vmax.f32 %v787, 0.0
      %v806 = vmax.f32 %v790, 0.0
      %v807 = vmax.f32 %v795, 0.0
      %v808 = vmax.f32 %v798, 0.0
      %v809 = vpack.c.bf16 %v802, %v801
      %v810 = vpack.c.bf16 %v804, %v803
      %v811 = vpack.c.bf16 %v806, %v805
      %v812 = vpack.c.bf16 %v808, %v807
      %v813 = vld [vmem:[%s4] sm:$0xf]
      %v814 = vld [vmem:[%s4 + $0x4] sm:$0xf]
      %v815 = vld [vmem:[%s4 + $0x8] sm:$0xf]
      %v816 = vld [vmem:[%s4 + $0xc] sm:$0xf]
      %v817 = vld [vmem:[%s4 + $0x10] sm:$0xf]
      %v818 = vld [vmem:[%s4 + $0x14] sm:$0xf]
      %v819 = vld [vmem:[%s4 + $0x18] sm:$0xf]
      %v820 = vld [vmem:[%s4 + $0x1c] sm:$0xf]
      %v821 = vld [vmem:[%s4 + $0x20] sm:$0xf]
      %v822 = vld [vmem:[%s4 + $0x24] sm:$0xf]
      %v823 = vld [vmem:[%s4 + $0x28] sm:$0xf]
      %v824 = vld [vmem:[%s4 + $0x2c] sm:$0xf]
      %v825 = vld [vmem:[%s4 + $0x30] sm:$0xf]
      %v826 = vld [vmem:[%s4 + $0x34] sm:$0xf]
      %v827 = vld [vmem:[%s4 + $0x38] sm:$0xf]
      %v828 = vld [vmem:[%s4 + $0x3c] sm:$0xf]
      %v829 = vld [vmem:[%s8] sm:$0x1]
      %v831 = vlaneseq
      %v832 = vshrl.u32 %v831, 7
      %v833 = vsub.s32 0, %v832
      %v834 = vrot.slane %v829, %v833
      %v852 = vunpack.c.l.b16 %v813
      %v853 = vunpack.c.l.b16 %v814
      %v854 = vunpack.c.l.b16 %v815
      %v855 = vunpack.c.l.b16 %v816
      %v856 = vunpack.c.l.b16 %v817
      %v857 = vunpack.c.l.b16 %v818
      %v858 = vunpack.c.l.b16 %v819
      %v859 = vunpack.c.l.b16 %v820
      %v860 = vunpack.c.l.b16 %v821
      %v861 = vunpack.c.l.b16 %v822
      %v862 = vunpack.c.l.b16 %v823
      %v863 = vunpack.c.l.b16 %v824
      %v864 = vunpack.c.l.b16 %v825
      %v865 = vunpack.c.l.b16 %v826
      %v866 = vunpack.c.l.b16 %v827
      %v867 = vunpack.c.l.b16 %v828
      %v868 = vpack.c.b16 %v853, %v852
      %v869 = vpack.c.b16 %v855, %v854
      %v870 = vpack.c.b16 %v857, %v856
      %v871 = vpack.c.b16 %v859, %v858
      %v872 = vpack.c.b16 %v861, %v860
      %v873 = vpack.c.b16 %v863, %v862
      %v874 = vpack.c.b16 %v865, %v864
      %v875 = vpack.c.b16 %v867, %v866
      %884 = vmatprep.subr.bf16.mxu0 0
      %885 = vmatpush1.bf16.msra.mxu0 %v875
      %886 = vmatprep.subr.bf16.mxu0 0
      %887 = vmatpush1.bf16.msra.mxu0 %v874
      %888 = vmatprep.subr.bf16.mxu0 0
      %889 = vmatpush1.bf16.msra.mxu0 %v873
      %890 = vmatprep.subr.bf16.mxu0 0
      %891 = vmatpush1.bf16.msra.mxu0 %v872
      %892 = vmatprep.subr.bf16.mxu0 0
      %893 = vmatpush1.bf16.msra.mxu0 %v871
      %894 = vmatprep.subr.bf16.mxu0 0
      %895 = vmatpush1.bf16.msra.mxu0 %v870
      %896 = vmatprep.subr.bf16.mxu0 0
      %897 = vmatpush1.bf16.msra.mxu0 %v869
      %898 = vmatprep.subr.bf16.mxu0 0
      %899 = vmatpush1.bf16.msra.mxu0 %v868
      %900 = vmatprep.subr.bf16.mxu0 0
      %901 = vmatpush2.bf16.msra.mxu0 0
      %902 = vmatprep.subr.bf16.mxu0 0
      %903 = vmatpush2.bf16.msra.mxu0 0
      %904 = vmatprep.subr.bf16.mxu0 0
      %905 = vmatpush2.bf16.msra.mxu0 0
      %906 = vmatprep.subr.bf16.mxu0 0
      %907 = vmatpush2.bf16.msra.mxu0 0
      %908 = vmatprep.subr.bf16.mxu0 0
      %909 = vmatpush2.bf16.msra.mxu0 0
      %910 = vmatprep.subr.bf16.mxu0 0
      %911 = vmatpush2.bf16.msra.mxu0 0
      %912 = vmatprep.subr.bf16.mxu0 0
      %913 = vmatpush2.bf16.msra.mxu0 0
      %914 = vmatprep.subr.bf16.mxu0 0
      %915 = vmatpush2.bf16.msra.mxu0 0
      %916 = vmatprep.mubr.bf16.mxu0 0
      %917 = vmatmul.mubr.bf16.gmra.mxu0 %v809
      %v918 = vpop.f32.mrf.mxu0
      %v919 = vadd.f32 %v834, %v918
      %v920 = vpop.f32.mrf.mxu0
      %v921 = vpop.f32.mrf.mxu0
      %v922 = vadd.f32 %v834, %v921
      %v923 = vpop.f32.mrf.mxu0
      %924 = vmatprep.mubr.bf16.mxu0 0
      %925 = vmatmul.mubr.bf16.gmra.mxu0 %v810
      %v926 = vpop.f32.mrf.mxu0
      %v927 = vadd.f32 %v834, %v926
      %v928 = vpop.f32.mrf.mxu0
      %v929 = vpop.f32.mrf.mxu0
      %v930 = vadd.f32 %v834, %v929
      %v931 = vpop.f32.mrf.mxu0
      %932 = vmatprep.mubr.bf16.mxu0 0
      %933 = vmatmul.mubr.bf16.gmra.mxu0 %v811
      %v934 = vpop.f32.mrf.mxu0
      %v935 = vadd.f32 %v834, %v934
      %v936 = vpop.f32.mrf.mxu0
      %v937 = vpop.f32.mrf.mxu0
      %v938 = vadd.f32 %v834, %v937
      %v939 = vpop.f32.mrf.mxu0
      %940 = vmatprep.mubr.bf16.mxu0 0
      %941 = vmatmul.mubr.bf16.gmra.mxu0 %v812
      %v942 = vpop.f32.mrf.mxu0
      %v943 = vadd.f32 %v834, %v942
      %v944 = vpop.f32.mrf.mxu0
      %v945 = vpop.f32.mrf.mxu0
      %v946 = vadd.f32 %v834, %v945
      %v947 = vpop.f32.mrf.mxu0
      %948 = vdwg.mxu0
      %v949 = vpack.c.bf16 %v922, %v919
      %v950 = vpack.c.bf16 %v930, %v927
      %v951 = vpack.c.bf16 %v938, %v935
      %v952 = vpack.c.bf16 %v946, %v943
      %v957 = vunpack.c.l.b16 %v949
      %v958 = vunpack.c.h.b16 %v949
      %v959 = vunpack.c.l.b16 %v950
      %v960 = vunpack.c.h.b16 %v950
      %v961 = vunpack.c.l.b16 %v951
      %v962 = vunpack.c.h.b16 %v951
      %v963 = vunpack.c.l.b16 %v952
      %v964 = vunpack.c.h.b16 %v952
      %v965 = vpack.c.b16 %v957, %v957
      %v966 = vpack.c.b16 %v958, %v958
      %v967 = vpack.c.b16 %v959, %v959
      %v968 = vpack.c.b16 %v960, %v960
      %v969 = vpack.c.b16 %v961, %v961
      %v970 = vpack.c.b16 %v962, %v962
      %v971 = vpack.c.b16 %v963, %v963
      %v972 = vpack.c.b16 %v964, %v964
      %981 = vst [vmem:[%s334] sm:$0xf] %v965
      %982 = vst [vmem:[%s334 + $0x4] sm:$0xf] %v966
      %983 = vst [vmem:[%s334 + $0x8] sm:$0xf] %v967
      %984 = vst [vmem:[%s334 + $0xc] sm:$0xf] %v968
      %985 = vst [vmem:[%s334 + $0x10] sm:$0xf] %v969
      %986 = vst [vmem:[%s334 + $0x14] sm:$0xf] %v970
      %987 = vst [vmem:[%s334 + $0x18] sm:$0xf] %v971
      %988 = vst [vmem:[%s334 + $0x1c] sm:$0xf] %v972
      %s989 = smul.u32 8, %s20
      %p990 = scmp.lt.s32.totalorder %s989, 31
      %s991 = scalar_select %p990, %s989, 31
      %s992 = smul.addr %s991, 4
      %s993 = scalar_lea.vmem %s9, %s992
      // Predicated region
      $region57: #{fully_connected_forward.1} parent=55 // pred_check
        %p994 = pneg %p232
      $region58: #{fully_connected_forward.1} parent=55 // pred_check_branch
        %996 = sbr.rel (%p994) target = $region60
      $region59: #{fully_connected_forward.1} parent=55 // pred_region
        %s997 = smul.u32 8, %s20
      $region60: #{fully_connected_forward.1} parent=55 // pred_fallthru
        _
    $region56: #{fully_connected_forward.1} parent=5 // pred_fallthru
      _
    %p998 = scmp.le.s32.totalorder 2, %s15
    // Predicated region
    $region61: #{fully_connected_forward.1} parent=5 // pred_check
      %p999 = pneg %p998
    $region62: #{fully_connected_forward.1} parent=5 // pred_check_branch
      %1001 = sbr.rel (%p999) target = $region64
    $region63: #{fully_connected_forward.1} parent=5 // pred_region
      %s1002 = ssub.s32 %s15, 2
      // Predicated region
      $region65: #{fully_connected_forward.1} parent=63 // pred_check
        %p1003 = pneg %p238
      $region66: #{fully_connected_forward.1} parent=63 // pred_check_branch
        %1005 = sbr.rel (%p1003) target = $region68
      $region67: #{fully_connected_forward.1} parent=63 // pred_region
        %s1006 = smul.u32 8, %s21
        %p1007 = scmp.lt.s32.totalorder %s1006, 31
        %s1008 = scalar_select %p1007, %s1006, 31
        %s1009 = smul.addr %s1008, 4
        %s1010 = scalar_lea.vmem %s9, %s1009
      $region68: #{fully_connected_forward.1} parent=63 // pred_fallthru
        _
    $region64: #{fully_connected_forward.1} parent=5 // pred_fallthru
      _
  $region6: #{fully_connected_forward.1} parent=0 // loop_footer
    %s19 = sadd.s32 1, %s15
  $region7: #{fully_connected_forward.1} parent=0 // loop_footer_branch
    %14 = sbr.rel target = $region3
  $region8: #{fully_connected_forward.1} parent=0 // loop_exit
    _

</llo_original>
